<compile_context>
chip_gen: v7x
topology: tpu7x:2x2x1
jax: 0.10.0
libtpu: 0.0.40
codegen_flags: <defaults>
</compile_context>

<pallas_src>
import jax
import jax.numpy as jnp
import numpy as np
from jax.experimental import pallas as pl
from jax.experimental.pallas import tpu as pltpu


def _round_up(n, m):
    return ((n + m - 1) // m) * m


def _choose_n2_tile(n2p, ns, cin):
    """Largest 128-multiple tile that divides n2p (<=512) and keeps the double-buffered
    grouped block under ~16 MiB; otherwise fall back to the full (padded) N2."""
    cin_lanes = _round_up(max(cin, 1), 128)
    best = None
    c = 128
    while c <= min(n2p, 512):
        if n2p % c == 0 and 2 * ns * c * cin_lanes * 2 <= 16 * 1024 * 1024:
            best = c
        c += 128
    return best if best is not None else n2p


# ---------------------------------------------------------------------------
# Pallas kernel: per-scale  SharedMLP (fused over nsample) -> max-pool over
#                nsample -> add hoisted feats2 branch -> post SharedMLP.
# ---------------------------------------------------------------------------
def _make_lfp_scale_kernel(nsample, n2_tile, n_mlp, n_post_rest):
    def kernel(*refs):
        g_ref = refs[0]                      # (1, ns, N2t, Cin)   bf16
        f2p_ref = refs[1]                    # (1, N2t, Po0)       f32 (hoisted f2 @ Wp_b)
        mlp_ws = refs[2:2 + n_mlp]           # (Cin_l, Cout_l)     bf16
        wpa_ref = refs[2 + n_mlp]            # (H_last, Po0)       bf16 (pooled half of Wp0)
        post_ws = refs[3 + n_mlp:3 + n_mlp + n_post_rest]
        out_ref = refs[-1]                   # (1, Po, N2t)        f32, lane-dense on N2

        cin = g_ref.shape[-1]
        # Fuse nsample into the matmul M dimension: (ns, N2t, Cin) -> (ns*N2t, Cin)
        # is a layout-free leading-dim merge (N2t is sublane-tile aligned).
        h = g_ref[0].reshape(nsample * n2_tile, cin)
        for w_ref in mlp_ws:
            h = jnp.dot(h, w_ref[...], preferred_element_type=jnp.float32)
            h = jnp.maximum(h, 0.0).astype(w_ref.dtype)

        # Max-pool over nsample: neighbor s occupies rows [s*N2t, (s+1)*N2t),
        # so the pool is a running VPU max over static slices (no XLU reduce).
        m = h[0:n2_tile]
        for s in range(1, nsample):
            m = jnp.maximum(m, h[s * n2_tile:(s + 1) * n2_tile])

        # post MLP on concat([pooled, feats2]) == pooled @ Wp_a + (hoisted) f2 @ Wp_b.
        o = jnp.dot(m, wpa_ref[...], preferred_element_type=jnp.float32)
        o = jnp.maximum(o + f2p_ref[0], 0.0)
        for w_ref in post_ws:
            o = jnp.dot(o.astype(w_ref.dtype), w_ref[...],
                        preferred_element_type=jnp.float32)
            o = jnp.maximum(o, 0.0)

        # Channels-first, lane-dense store: (N2t, Po) -> (Po, N2t).
        out_ref[0] = jnp.transpose(o).astype(out_ref.dtype)

    return kernel


def lfp_scale_pallas(grouped, f2_post, mlp_ws, wpa, post_rest,
                     compute_dtype=jnp.bfloat16):
    """grouped: (B, ns, N2p, Cin) f32;  f2_post: (B, N2p, Po0) f32 (= feats2 @ Wp_b)."""
    B, ns, N2p, Cin = grouped.shape
    Po0 = wpa.shape[1]
    Po = post_rest[-1].shape[1] if post_rest else Po0
    n2t = _choose_n2_tile(N2p, ns, Cin)
    assert N2p % n2t == 0

    g = grouped.astype(compute_dtype)
    f2p = f2_post.astype(jnp.float32)
    ws = ([w.astype(compute_dtype) for w in mlp_ws]
          + [wpa.astype(compute_dtype)]
          + [w.astype(compute_dtype) for w in post_rest])

    kernel = _make_lfp_scale_kernel(ns, n2t, len(mlp_ws), len(post_rest))

    in_specs = [
        pl.BlockSpec((1, ns, n2t, Cin), lambda b, n: (b, 0, n, 0)),
        pl.BlockSpec((1, n2t, Po0), lambda b, n: (b, n, 0)),
    ] + [pl.BlockSpec(w.shape, lambda b, n: (0, 0)) for w in ws]

    return pl.pallas_call(
        kernel,
        out_shape=jax.ShapeDtypeStruct((B, Po, N2p), jnp.float32),
        grid_spec=pltpu.PrefetchScalarGridSpec(
            num_scalar_prefetch=0,
            grid=(B, N2p // n2t),
            in_specs=in_specs,
            out_specs=pl.BlockSpec((1, Po, n2t), lambda b, n: (b, 0, n)),
        ),
        compiler_params=pltpu.CompilerParams(
            dimension_semantics=("parallel", "parallel"),
            vmem_limit_bytes=32 * 1024 * 1024,
        ),
    )(g, f2p, *ws)


# ---------------------------------------------------------------------------
# Plain-JAX glue: ball query + grouping (data-dependent gather).
# ---------------------------------------------------------------------------
def query_and_group(xyz1, xyz2, feats1_nlc, radius, nsample):
    # TODO(synk): ball-query neighbor selection is a data-dependent argsort/gather with
    # no clean Pallas equivalent; it is done in plain JAX glue (matches CUDA ball_query:
    # first `nsample` in-radius points in index order, padded with the first one, 0 if none).
    B, N1, _ = xyz1.shape
    diff = xyz1[:, None, :, :] - xyz2[:, :, None, :]          # (B, N2, N1, 3)
    d2 = jnp.sum(diff * diff, axis=-1)                        # (B, N2, N1)
    mask = d2 < radius * radius
    jidx = jnp.arange(N1)
    key = jnp.where(mask, jidx[None, None, :], N1 + jidx[None, None, :])
    sorted_idx = jnp.argsort(key, axis=-1)[..., :nsample]     # in-radius first, index order
    num_in = jnp.sum(mask, axis=-1, keepdims=True)            # (B, N2, 1)
    first = sorted_idx[..., :1]
    slot = jnp.arange(nsample)[None, None, :]
    idx = jnp.where(slot < num_in, sorted_idx, first)
    idx = jnp.where(num_in > 0, idx, 0)                       # zero-filled buffer default

    # Transpose the SMALL index tensor (not the big feature tensor) so the gather
    # writes the kernel's neighbor-major layout (B, ns, N2, C) directly.
    idx_t = jnp.transpose(idx, (0, 2, 1))                     # (B, ns, N2)
    bidx = jnp.arange(B)[:, None, None]
    g_xyz = xyz1[bidx, idx_t] - xyz2[:, None, :, :]           # (B, ns, N2, 3) relative
    g_feat = feats1_nlc[bidx, idx_t]                          # (B, ns, N2, C1)
    return jnp.concatenate([g_xyz, g_feat], axis=-1)          # use_xyz=True: [xyz | feats]


# ---------------------------------------------------------------------------
# Module
# ---------------------------------------------------------------------------
class PointnetLFPModuleMSGPallas:
    def __init__(self, *, mlps, radii, nsamples, post_mlp, key,
                 bn=True, use_xyz=True, sample_uniformly=False):
        assert len(mlps) == len(nsamples) == len(radii)
        assert not sample_uniformly
        self.radii = list(radii)
        self.nsamples = list(nsamples)
        bn_scale = (1.0 / np.sqrt(1.0 + 1e-5)) if bn else 1.0  # eval-mode BN folded in
        keys = jax.random.split(key, 64)
        kc = 0

        self.mlp_weights = []
        for i in range(len(radii)):
            spec = list(mlps[i])
            if use_xyz:
                spec[0] += 3
            ws = []
            for cin, cout in zip(spec[:-1], spec[1:]):
                w = jax.random.normal(keys[kc], (cin, cout), jnp.float32) / np.sqrt(cin)
                kc += 1
                ws.append(w * bn_scale)
            self.mlp_weights.append(ws)
        h_lasts = {ws[-1].shape[1] for ws in self.mlp_weights}
        assert len(h_lasts) == 1       # shared post_mlp requires equal per-scale width
        self.h_last = h_lasts.pop()

        self.post_weights = []
        for cin, cout in zip(post_mlp[:-1], post_mlp[1:]):
            w = jax.random.normal(keys[kc], (cin, cout), jnp.float32) / np.sqrt(cin)
            kc += 1
            self.post_weights.append(w * bn_scale)

    def __call__(self, xyz2, xyz1, features2, features1):
        # xyz2: (B,N2,3)  xyz1: (B,N1,3)  features2: (B,C2,N2)  features1: (B,C1,N1)
        feats1_nlc = jnp.transpose(features1, (0, 2, 1))      # (B, N1, C1)
        feats2_nlc = jnp.transpose(features2, (0, 2, 1))      # (B, N2, C2)
        B, N2, _ = xyz2.shape
        C2 = feats2_nlc.shape[-1]

        # Pad N2 so tiles are sublane/lane friendly ((8,128) rule, bf16 packing).
        n2p = _round_up(N2, 128) if N2 >= 256 else _round_up(N2, 16)
        if n2p != N2:
            pad = n2p - N2
            xyz2_p = jnp.pad(xyz2, ((0, 0), (0, pad), (0, 0)))
            feats2_p = jnp.pad(feats2_nlc, ((0, 0), (0, pad), (0, 0)))
        else:
            xyz2_p, feats2_p = xyz2, feats2_nlc

        # Split the first post layer (channel concat == split matmul) and hoist the
        # scale-invariant feats2 branch: computed once, reused by every scale.
        wp0 = self.post_weights[0]
        assert wp0.shape[0] == self.h_last + C2
        wpa, wpb = wp0[:self.h_last], wp0[self.h_last:]
        f2_post = jnp.einsum(
            'bnc,cd->bnd',
            feats2_p.astype(jnp.bfloat16).astype(jnp.float32),
            wpb.astype(jnp.bfloat16).astype(jnp.float32))     # (B, N2p, Po0) f32

        outs = []
        for i in range(len(self.radii)):
            grouped = query_and_group(xyz1, xyz2_p, feats1_nlc,
                                      self.radii[i], self.nsamples[i])
            o = lfp_scale_pallas(grouped, f2_post, self.mlp_weights[i],
                                 wpa, self.post_weights[1:])  # (B, Po, N2p)
            outs.append(o)
        out = jnp.concatenate(outs, axis=1)                   # (B, n_scales*Po, N2p)
        return out[:, :, :N2]


# ---------------------------------------------------------------------------
# Pure-JAX reference (same math, mirroring the kernel's bf16 quantization).
# ---------------------------------------------------------------------------
def reference_forward(module, xyz2, xyz1, features2, features1):
    f32 = jnp.float32
    q = lambda x: x.astype(jnp.bfloat16).astype(f32)          # mirror bf16 casts
    feats1_nlc = jnp.transpose(features1, (0, 2, 1))
    feats2_nlc = jnp.transpose(features2, (0, 2, 1))
    wp0 = module.post_weights[0]
    wpa, wpb = wp0[:module.h_last], wp0[module.h_last:]
    f2_post = jnp.einsum('bnc,cd->bnd', q(feats2_nlc), q(wpb))
    outs = []
    for i in range(len(module.radii)):
        grouped = query_and_group(xyz1, xyz2, feats1_nlc,
                                  module.radii[i], module.nsamples[i])  # (B, ns, N2, Cin)
        h = q(grouped)
        for w in module.mlp_weights[i]:
            h = q(jnp.maximum(jnp.einsum('bsnc,cd->bsnd', h, q(w)), 0.0))
        m = jnp.max(h, axis=1)                                          # (B, N2, H_last)
        o = jnp.maximum(jnp.einsum('bnc,cd->bnd', m, q(wpa)) + f2_post, 0.0)
        for w in module.post_weights[1:]:
            o = jnp.maximum(jnp.einsum('bnc,cd->bnd', q(o), q(w)), 0.0)
        outs.append(o)
    return jnp.transpose(jnp.concatenate(outs, axis=-1), (0, 2, 1))


if __name__ == "__main__":
    B, N1, N2, C1, C2 = 2, 16, 8, 6, 4
    key = jax.random.PRNGKey(0)
    k1, k2, k3, k4, kw = jax.random.split(key, 5)
    xyz1 = jax.random.uniform(k1, (B, N1, 3), jnp.float32)
    xyz2 = jax.random.uniform(k2, (B, N2, 3), jnp.float32)
    features1 = jax.random.normal(k3, (B, C1, N1), jnp.float32)
    features2 = jax.random.normal(k4, (B, C2, N2), jnp.float32)

    module = PointnetLFPModuleMSGPallas(
        mlps=[[C1, 16, 32], [C1, 16, 32]],
        radii=[0.3, 0.6],
        nsamples=[4, 8],
        post_mlp=[32 + C2, 32],
        bn=True,
        use_xyz=True,
        key=kw,
    )

    out = module(xyz2, xyz1, features2, features1)
    out = jax.block_until_ready(out)
    assert out.shape == (B, 2 * 32, N2), out.shape

    ref = reference_forward(module, xyz2, xyz1, features2, features1)
    np.testing.assert_allclose(np.asarray(out), np.asarray(ref), rtol=1e-3, atol=1e-3)
    print("KERNEL_OK")
</pallas_src>

<mosaic_0001>
module attributes {stable_mosaic.version = 11 : i64} {
  func.func @kernel(%arg0: i32, %arg1: i32, %arg2: memref<1x4x16x9xbf16, #tpu.memory_space<vmem>>, %arg3: memref<1x16x32xf32, #tpu.memory_space<vmem>>, %arg4: memref<9x16xbf16, #tpu.memory_space<vmem>>, %arg5: memref<16x32xbf16, #tpu.memory_space<vmem>>, %arg6: memref<32x32xbf16, #tpu.memory_space<vmem>>, %arg7: memref<1x32x16xf32, #tpu.memory_space<vmem>>) attributes {dimension_semantics = [#tpu.dimension_semantics<parallel>, #tpu.dimension_semantics<parallel>], iteration_bounds = array<i64: 2, 1>, scalar_prefetch = 0 : i64, scratch_operands = 0 : i64, tpu.core_type = #tpu.core_type<tc>, window_params = [{transform_indices = @transform_0, window_bounds = array<i64: 1, 4, 16, 9>}, {transform_indices = @transform_1, window_bounds = array<i64: 1, 16, 32>}, {pipeline_mode = #tpu.pipeline_mode<synchronous>, transform_indices = @transform_2, window_bounds = array<i64: 9, 16>}, {pipeline_mode = #tpu.pipeline_mode<synchronous>, transform_indices = @transform_3, window_bounds = array<i64: 16, 32>}, {pipeline_mode = #tpu.pipeline_mode<synchronous>, transform_indices = @transform_4, window_bounds = array<i64: 32, 32>}, {transform_indices = @transform_5, window_bounds = array<i64: 1, 32, 16>}]} {
    %c0 = arith.constant 0 : index
    %c0_0 = arith.constant 0 : index
    %c0_1 = arith.constant 0 : index
    %c0_2 = arith.constant 0 : index
    %0 = vector.load %arg2[%c0, %c0_0, %c0_1, %c0_2] : memref<1x4x16x9xbf16, #tpu.memory_space<vmem>>, vector<1x4x16x9xbf16>
    %1 = vector.shape_cast %0 : vector<1x4x16x9xbf16> to vector<4x16x9xbf16>
    %2 = vector.shape_cast %1 : vector<4x16x9xbf16> to vector<64x9xbf16>
    %c0_3 = arith.constant 0 : index
    %c0_4 = arith.constant 0 : index
    %3 = vector.load %arg4[%c0_3, %c0_4] : memref<9x16xbf16, #tpu.memory_space<vmem>>, vector<9x16xbf16>
    %cst = arith.constant dense<0.000000e+00> : vector<64x16xf32>
    %4 = tpu.matmul %2, %3, %cst {dimension_numbers = #tpu.dot_dimension_numbers<[1], [0], [0], [1], [0, 0, 1, 1], [], []>} : vector<64x9xbf16>, vector<9x16xbf16>, vector<64x16xf32> -> vector<64x16xf32>
    %cst_5 = arith.constant 0.000000e+00 : f32
    %5 = vector.broadcast %cst_5 : f32 to vector<64x16xf32>
    %6 = arith.maximumf %4, %5 : vector<64x16xf32>
    %7 = arith.truncf %6 : vector<64x16xf32> to vector<64x16xbf16>
    %c0_6 = arith.constant 0 : index
    %c0_7 = arith.constant 0 : index
    %8 = vector.load %arg5[%c0_6, %c0_7] : memref<16x32xbf16, #tpu.memory_space<vmem>>, vector<16x32xbf16>
    %cst_8 = arith.constant dense<0.000000e+00> : vector<64x32xf32>
    %9 = tpu.matmul %7, %8, %cst_8 {dimension_numbers = #tpu.dot_dimension_numbers<[1], [0], [0], [1], [0, 0, 1, 1], [], []>} : vector<64x16xbf16>, vector<16x32xbf16>, vector<64x32xf32> -> vector<64x32xf32>
    %cst_9 = arith.constant 0.000000e+00 : f32
    %10 = vector.broadcast %cst_9 : f32 to vector<64x32xf32>
    %11 = arith.maximumf %9, %10 : vector<64x32xf32>
    %12 = arith.truncf %11 : vector<64x32xf32> to vector<64x32xbf16>
    %13 = vector.extract_strided_slice %12 {offsets = [0, 0], sizes = [16, 32], strides = [1, 1]} : vector<64x32xbf16> to vector<16x32xbf16>
    %14 = vector.extract_strided_slice %12 {offsets = [16, 0], sizes = [16, 32], strides = [1, 1]} : vector<64x32xbf16> to vector<16x32xbf16>
    %15 = arith.maximumf %13, %14 : vector<16x32xbf16>
    %16 = vector.extract_strided_slice %12 {offsets = [32, 0], sizes = [16, 32], strides = [1, 1]} : vector<64x32xbf16> to vector<16x32xbf16>
    %17 = arith.maximumf %15, %16 : vector<16x32xbf16>
    %18 = vector.extract_strided_slice %12 {offsets = [48, 0], sizes = [16, 32], strides = [1, 1]} : vector<64x32xbf16> to vector<16x32xbf16>
    %19 = arith.maximumf %17, %18 : vector<16x32xbf16>
    %c0_10 = arith.constant 0 : index
    %c0_11 = arith.constant 0 : index
    %20 = vector.load %arg6[%c0_10, %c0_11] : memref<32x32xbf16, #tpu.memory_space<vmem>>, vector<32x32xbf16>
    %cst_12 = arith.constant dense<0.000000e+00> : vector<16x32xf32>
    %21 = tpu.matmul %19, %20, %cst_12 {dimension_numbers = #tpu.dot_dimension_numbers<[1], [0], [0], [1], [0, 0, 1, 1], [], []>} : vector<16x32xbf16>, vector<32x32xbf16>, vector<16x32xf32> -> vector<16x32xf32>
    %c0_13 = arith.constant 0 : index
    %c0_14 = arith.constant 0 : index
    %c0_15 = arith.constant 0 : index
    %22 = vector.load %arg3[%c0_13, %c0_14, %c0_15] : memref<1x16x32xf32, #tpu.memory_space<vmem>>, vector<1x16x32xf32>
    %23 = vector.shape_cast %22 : vector<1x16x32xf32> to vector<16x32xf32>
    %24 = arith.addf %21, %23 : vector<16x32xf32>
    %cst_16 = arith.constant 0.000000e+00 : f32
    %25 = vector.broadcast %cst_16 : f32 to vector<16x32xf32>
    %26 = arith.maximumf %24, %25 : vector<16x32xf32>
    %27 = tpu.transpose %26, [1, 0] : vector<16x32xf32> -> vector<32x16xf32>
    %c0_17 = arith.constant 0 : index
    %c0_18 = arith.constant 0 : index
    %c0_19 = arith.constant 0 : index
    %28 = vector.load %arg7[%c0_17, %c0_18, %c0_19] : memref<1x32x16xf32, #tpu.memory_space<vmem>>, vector<1x32x16xf32>
    %29 = vector.shape_cast %28 : vector<1x32x16xf32> to vector<32x16xf32>
    %30 = vector.shape_cast %27 : vector<32x16xf32> to vector<1x32x16xf32>
    tpu.vector_store %arg7[%c0_17, %c0_18, %c0_19], %30 {strides = array<i32>} : memref<1x32x16xf32, #tpu.memory_space<vmem>>, vector<1x32x16xf32>,
    return
  }
  func.func @transform_0(%arg0: i32, %arg1: i32) -> (i32, i32, i32, i32) {
    %c0_i32 = arith.constant 0 : i32
    %c0_i32_0 = arith.constant 0 : i32
    %c0_i32_1 = arith.constant 0 : i32
    return %arg0, %c0_i32, %arg1, %c0_i32_0 : i32, i32, i32, i32
  }
  func.func @transform_1(%arg0: i32, %arg1: i32) -> (i32, i32, i32) {
    %c0_i32 = arith.constant 0 : i32
    %c0_i32_0 = arith.constant 0 : i32
    return %arg0, %arg1, %c0_i32 : i32, i32, i32
  }
  func.func @transform_2(%arg0: i32, %arg1: i32) -> (i32, i32) {
    %c0_i32 = arith.constant 0 : i32
    %c0_i32_0 = arith.constant 0 : i32
    %c0_i32_1 = arith.constant 0 : i32
    return %c0_i32, %c0_i32_0 : i32, i32
  }
  func.func @transform_3(%arg0: i32, %arg1: i32) -> (i32, i32) {
    %c0_i32 = arith.constant 0 : i32
    %c0_i32_0 = arith.constant 0 : i32
    %c0_i32_1 = arith.constant 0 : i32
    return %c0_i32, %c0_i32_0 : i32, i32
  }
  func.func @transform_4(%arg0: i32, %arg1: i32) -> (i32, i32) {
    %c0_i32 = arith.constant 0 : i32
    %c0_i32_0 = arith.constant 0 : i32
    %c0_i32_1 = arith.constant 0 : i32
    return %c0_i32, %c0_i32_0 : i32, i32
  }
  func.func @transform_5(%arg0: i32, %arg1: i32) -> (i32, i32, i32) {
    %c0_i32 = arith.constant 0 : i32
    %c0_i32_0 = arith.constant 0 : i32
    return %arg0, %c0_i32, %arg1 : i32, i32, i32
  }
}

</mosaic_0001>

<llo_original>
// kernel: tpu_custom_call.1
$region0: #{tpu_custom_call.1}
  #allocation0 [shape = 'u32[]', space=smem, size = 0x4, offset = 0x4, fixed_abs, tag = 'smem constant byte address 0x4 - core index']
  #allocation1 [shape = 'u32[144,128]{1,0:T(1,128)}', space=vmem, size = 0x12000, scoped, tag = 'internal scratch']
  %s0 = inlined_call_operand.vmem [shape: bf16[2,4,16,9], index: 0, kind: input, shape index: {}]
  %s1 = inlined_call_operand.vmem [shape: f32[2,16,32], index: 1, kind: input, shape index: {}]
  %s2 = inlined_call_operand.vmem [shape: bf16[9,16], index: 2, kind: input, shape index: {}]
  %s3 = inlined_call_operand.vmem [shape: bf16[16,32], index: 3, kind: input, shape index: {}]
  %s4 = inlined_call_operand.vmem [shape: bf16[32,32], index: 4, kind: input, shape index: {}]
  %s5 = inlined_call_operand.vmem [shape: f32[2,32,16], index: 5, kind: output, shape index: {}]
  %s6 = sld [smem:[#allocation0]]
  $region53: #{tpu_custom_call.1} parent=0
    _
  %s8 = ssub.s32 1, %s6
  %s9 = scalar_select 0, %s8, %s6
  loop: start=0, step=1, limit=4
  $region2: #{tpu_custom_call.1} parent=0 // loop_pre_header
    _
  $region3: #{tpu_custom_call.1} parent=0 // loop_header
    %s11 = sphi 0, %s15
    %p12 = scmp.ge.s32.totalorder %s11, 4
    %s18 = sphi 0, %s30
    %s19 = sphi 0, %s26
    %s20 = sphi 0, %s18
    %s21 = sphi 0, %s19
    %s22 = sphi 0, %s20
    %s23 = sphi 0, %s21
    %s35 = sphi 0, %s37
    %s38 = sphi 0, %s35
    %s39 = sphi 0, %s38
    %s55 = sphi 0, %s39
    %s63 = sphi 0, %s65
    %s66 = sphi 0, %s63
    %s67 = sphi 0, %s66
    %s83 = sphi 0, %s67
    %s87 = sphi 0, %s87
    %s89 = sphi 0, %s87
    %s90 = sphi 0, %s89
    %s104 = sphi 0, %s90
    %s108 = sphi 0, %s108
    %s110 = sphi 0, %s108
    %s111 = sphi 0, %s110
    %s125 = sphi 0, %s111
    %s129 = sphi 0, %s129
    %s131 = sphi 0, %s129
    %s132 = sphi 0, %s131
    %s146 = sphi 0, %s132
    %s154 = sphi 0, %s156
    %s157 = sphi 0, %s154
    %s158 = sphi 0, %s157
    %s174 = sphi 0, %s158
  $region4: #{tpu_custom_call.1} parent=0 // loop_header_branch
    %14 = sbr.rel (%p12) target = $region8
  $region5: #{tpu_custom_call.1} parent=0 // loop_body
    %s16 = ssub.s32 %s11, 1
    %s17 = ssub.s32 %s11, 2
    %s24 = sadd.s32 1, %s19
    %p25 = scmp.ge.s32.totalorder %s24, 1
    %s26 = scalar_select %p25, 0, %s24
    %s27 = sadd.s32 1, %s18
    %s28 = scalar_select %p25, %s27, %s18
    %p29 = scmp.ge.s32.totalorder %s28, 2
    %s30 = scalar_select %p29, 0, %s28
    %s31 = ssub.s32 %s18, %s30
    %s32 = ssub.s32 %s19, %s26
    %s33 = sor.u32 %s31, %s32
    %p34 = scmp.eq.s32.totalorder %s33, 0
    %s36 = sadd.s32 %s35, 1
    %s37 = scalar_select %p34, %s35, %s36
    %p40 = pneg %p34
    %p41 = scmp.eq.s32.totalorder %s11, 1
    %p42 = por %p40, %p41
    %p43 = scmp.ne.s32.totalorder %s35, %s38
    %p44 = scmp.eq.s32.totalorder %s11, 0
    %p45 = por %p43, %p44
    %p46 = scmp.ne.s32.totalorder %s35, %s38
    %p47 = scmp.eq.s32.totalorder %s16, 1
    %p48 = por %p46, %p47
    %p49 = scmp.ne.s32.totalorder %s38, %s39
    %p50 = scmp.eq.s32.totalorder %s16, 0
    %p51 = por %p49, %p50
    %p52 = scmp.ne.s32.totalorder %s38, %s39
    %p53 = scmp.eq.s32.totalorder %s17, 1
    %p54 = por %p52, %p53
    %p56 = scmp.ne.s32.totalorder %s39, %s55
    %p57 = scmp.eq.s32.totalorder %s17, 0
    %p58 = por %p56, %p57
    %s59 = ssub.s32 %s18, %s30
    %s60 = ssub.s32 %s19, %s26
    %s61 = sor.u32 %s59, %s60
    %p62 = scmp.eq.s32.totalorder %s61, 0
    %s64 = sadd.s32 %s63, 1
    %s65 = scalar_select %p62, %s63, %s64
    %p68 = pneg %p62
    %p69 = scmp.eq.s32.totalorder %s11, 1
    %p70 = por %p68, %p69
    %p71 = scmp.ne.s32.totalorder %s63, %s66
    %p72 = scmp.eq.s32.totalorder %s11, 0
    %p73 = por %p71, %p72
    %p74 = scmp.ne.s32.totalorder %s63, %s66
    %p75 = scmp.eq.s32.totalorder %s16, 1
    %p76 = por %p74, %p75
    %p77 = scmp.ne.s32.totalorder %s66, %s67
    %p78 = scmp.eq.s32.totalorder %s16, 0
    %p79 = por %p77, %p78
    %p80 = scmp.ne.s32.totalorder %s66, %s67
    %p81 = scmp.eq.s32.totalorder %s17, 1
    %p82 = por %p80, %p81
    %p84 = scmp.ne.s32.totalorder %s67, %s83
    %p85 = scmp.eq.s32.totalorder %s17, 0
    %p86 = por %p84, %p85
    %s88 = sadd.s32 %s87, 1
    %p91 = scmp.eq.s32.totalorder %s11, 1
    %p92 = scmp.ne.s32.totalorder %s87, %s89
    %p93 = scmp.eq.s32.totalorder %s11, 0
    %p94 = por %p92, %p93
    %p95 = scmp.ne.s32.totalorder %s87, %s89
    %p96 = scmp.eq.s32.totalorder %s16, 1
    %p97 = por %p95, %p96
    %p98 = scmp.ne.s32.totalorder %s89, %s90
    %p99 = scmp.eq.s32.totalorder %s16, 0
    %p100 = por %p98, %p99
    %p101 = scmp.ne.s32.totalorder %s89, %s90
    %p102 = scmp.eq.s32.totalorder %s17, 1
    %p103 = por %p101, %p102
    %p105 = scmp.ne.s32.totalorder %s90, %s104
    %p106 = scmp.eq.s32.totalorder %s17, 0
    %p107 = por %p105, %p106
    %s109 = sadd.s32 %s108, 1
    %p112 = scmp.eq.s32.totalorder %s11, 1
    %p113 = scmp.ne.s32.totalorder %s108, %s110
    %p114 = scmp.eq.s32.totalorder %s11, 0
    %p115 = por %p113, %p114
    %p116 = scmp.ne.s32.totalorder %s108, %s110
    %p117 = scmp.eq.s32.totalorder %s16, 1
    %p118 = por %p116, %p117
    %p119 = scmp.ne.s32.totalorder %s110, %s111
    %p120 = scmp.eq.s32.totalorder %s16, 0
    %p121 = por %p119, %p120
    %p122 = scmp.ne.s32.totalorder %s110, %s111
    %p123 = scmp.eq.s32.totalorder %s17, 1
    %p124 = por %p122, %p123
    %p126 = scmp.ne.s32.totalorder %s111, %s125
    %p127 = scmp.eq.s32.totalorder %s17, 0
    %p128 = por %p126, %p127
    %s130 = sadd.s32 %s129, 1
    %p133 = scmp.eq.s32.totalorder %s11, 1
    %p134 = scmp.ne.s32.totalorder %s129, %s131
    %p135 = scmp.eq.s32.totalorder %s11, 0
    %p136 = por %p134, %p135
    %p137 = scmp.ne.s32.totalorder %s129, %s131
    %p138 = scmp.eq.s32.totalorder %s16, 1
    %p139 = por %p137, %p138
    %p140 = scmp.ne.s32.totalorder %s131, %s132
    %p141 = scmp.eq.s32.totalorder %s16, 0
    %p142 = por %p140, %p141
    %p143 = scmp.ne.s32.totalorder %s131, %s132
    %p144 = scmp.eq.s32.totalorder %s17, 1
    %p145 = por %p143, %p144
    %p147 = scmp.ne.s32.totalorder %s132, %s146
    %p148 = scmp.eq.s32.totalorder %s17, 0
    %p149 = por %p147, %p148
    %s150 = ssub.s32 %s18, %s30
    %s151 = ssub.s32 %s19, %s26
    %s152 = sor.u32 %s150, %s151
    %p153 = scmp.eq.s32.totalorder %s152, 0
    %s155 = sadd.s32 %s154, 1
    %s156 = scalar_select %p153, %s154, %s155
    %p159 = pneg %p153
    %p160 = scmp.eq.s32.totalorder %s11, 1
    %p161 = por %p159, %p160
    %p162 = scmp.ne.s32.totalorder %s154, %s157
    %p163 = scmp.eq.s32.totalorder %s11, 0
    %p164 = por %p162, %p163
    %p165 = scmp.ne.s32.totalorder %s154, %s157
    %p166 = scmp.eq.s32.totalorder %s16, 1
    %p167 = por %p165, %p166
    %p168 = scmp.ne.s32.totalorder %s157, %s158
    %p169 = scmp.eq.s32.totalorder %s16, 0
    %p170 = por %p168, %p169
    %p171 = scmp.ne.s32.totalorder %s157, %s158
    %p172 = scmp.eq.s32.totalorder %s17, 1
    %p173 = por %p171, %p172
    %p175 = scmp.ne.s32.totalorder %s158, %s174
    %p176 = scmp.eq.s32.totalorder %s17, 0
    %p177 = por %p175, %p176
    %p178 = scmp.le.s32.totalorder 1, %s11
    %p179 = scmp.lt.s32.totalorder %s11, 3
    %p180 = pnand %p178, %p179
    %p181 = pneg %p180
    // Predicated region
    $region9: #{tpu_custom_call.1} parent=5 // pred_check
      _
    $region10: #{tpu_custom_call.1} parent=5 // pred_check_branch
      %183 = sbr.rel (%p180) target = $region12
    $region11: #{tpu_custom_call.1} parent=5 // pred_region
      %s184 = ssub.s32 %s11, 1
      // Predicated region
      $region13: #{tpu_custom_call.1} parent=11 // pred_check
        %p185 = pneg %p100
      $region14: #{tpu_custom_call.1} parent=11 // pred_check_branch
        %187 = sbr.rel (%p185) target = $region16
      $region15: #{tpu_custom_call.1} parent=11 // pred_region
        _
      $region16: #{tpu_custom_call.1} parent=11 // pred_fallthru
        _
      // Predicated region
      $region17: #{tpu_custom_call.1} parent=11 // pred_check
        %p188 = pneg %p121
      $region18: #{tpu_custom_call.1} parent=11 // pred_check_branch
        %190 = sbr.rel (%p188) target = $region20
      $region19: #{tpu_custom_call.1} parent=11 // pred_region
        _
      $region20: #{tpu_custom_call.1} parent=11 // pred_fallthru
        _
      // Predicated region
      $region21: #{tpu_custom_call.1} parent=11 // pred_check
        %p191 = pneg %p142
      $region22: #{tpu_custom_call.1} parent=11 // pred_check_branch
        %193 = sbr.rel (%p191) target = $region24
      $region23: #{tpu_custom_call.1} parent=11 // pred_region
        _
      $region24: #{tpu_custom_call.1} parent=11 // pred_fallthru
        _
    $region12: #{tpu_custom_call.1} parent=5 // pred_fallthru
      _
    %p194 = scmp.lt.s32.totalorder %s11, 2
    // Predicated region
    $region25: #{tpu_custom_call.1} parent=5 // pred_check
      %p195 = pneg %p194
    $region26: #{tpu_custom_call.1} parent=5 // pred_check_branch
      %197 = sbr.rel (%p195) target = $region28
    $region27: #{tpu_custom_call.1} parent=5 // pred_region
      // Predicated region
      $region29: #{tpu_custom_call.1} parent=27 // pred_check
        %p198 = pneg %p45
      $region30: #{tpu_custom_call.1} parent=27 // pred_check_branch
        %200 = sbr.rel (%p198) target = $region32
      $region31: #{tpu_custom_call.1} parent=27 // pred_region
        %s201 = smul.u32 2, %s19
        %p202 = scmp.lt.s32.totalorder %s18, 1
        %s203 = scalar_select %p202, %s18, 1
        %p204 = scmp.lt.s32.totalorder %s201, 1
        %s205 = scalar_select %p204, %s201, 1
        %s206 = smul.addr %s203, 8
        %s207 = sadd.s32 %s205, %s206
        %s208 = smul.addr %s207, 4
        %s209 = scalar_lea.vmem %s0, %s208
        %s210 = smul.u32 2, %s19
      $region32: #{tpu_custom_call.1} parent=27 // pred_fallthru
        _
      // Predicated region
      $region33: #{tpu_custom_call.1} parent=27 // pred_check
        %p211 = pneg %p73
      $region34: #{tpu_custom_call.1} parent=27 // pred_check_branch
        %213 = sbr.rel (%p211) target = $region36
      $region35: #{tpu_custom_call.1} parent=27 // pred_region
        %s214 = smul.u32 2, %s19
        %p215 = scmp.lt.s32.totalorder %s18, 1
        %s216 = scalar_select %p215, %s18, 1
        %p217 = scmp.lt.s32.totalorder %s214, 1
        %s218 = scalar_select %p217, %s214, 1
        %s219 = smul.addr %s216, 2
        %s220 = sadd.s32 %s218, %s219
        %s221 = smul.addr %s220, 8
        %s222 = scalar_lea.vmem %s1, %s221
        %s223 = smul.u32 2, %s19
      $region36: #{tpu_custom_call.1} parent=27 // pred_fallthru
        _
    $region28: #{tpu_custom_call.1} parent=5 // pred_fallthru
      _
    %p224 = scmp.le.s32.totalorder 1, %s11
    %p225 = scmp.lt.s32.totalorder %s11, 3
    %p226 = pnand %p224, %p225
    %p227 = pneg %p226
    // Predicated region
    $region37: #{tpu_custom_call.1} parent=5 // pred_check
      _
    $region38: #{tpu_custom_call.1} parent=5 // pred_check_branch
      %229 = sbr.rel (%p226) target = $region40
    $region39: #{tpu_custom_call.1} parent=5 // pred_region
      %s230 = ssub.s32 %s11, 1
      %s231 = smul.u32 2, %s21
      %p232 = scmp.lt.s32.totalorder %s20, 1
      %s233 = scalar_select %p232, %s20, 1
      %p234 = scmp.lt.s32.totalorder %s231, 1
      %s235 = scalar_select %p234, %s231, 1
      %s236 = smul.addr %s233, 8
      %s237 = sadd.s32 %s235, %s236
      %s238 = smul.addr %s237, 4
      %s239 = scalar_lea.vmem %s0, %s238
      %p240 = pneg %p51
      %p241 = pneg %p48
      %s242 = smul.u32 2, %s21
      %p243 = scmp.lt.s32.totalorder %s20, 1
      %s244 = scalar_select %p243, %s20, 1
      %p245 = scmp.lt.s32.totalorder %s242, 1
      %s246 = scalar_select %p245, %s242, 1
      %s247 = smul.addr %s244, 2
      %s248 = sadd.s32 %s246, %s247
      %s249 = smul.addr %s248, 8
      %s250 = scalar_lea.vmem %s1, %s249
      %p251 = pneg %p79
      %p252 = pneg %p76
      %p253 = pneg %p100
      %p254 = pneg %p97
      %p255 = pneg %p121
      %p256 = pneg %p118
      %p257 = pneg %p142
      %p258 = pneg %p139
      %p259 = pneg %p170
      %p260 = pneg %p167
      %p261 = scmp.lt.s32.totalorder %s20, 1
      %s262 = scalar_select %p261, %s20, 1
      %p263 = scmp.lt.s32.totalorder %s21, 0
      %s264 = scalar_select %p263, %s21, 0
      %s265 = smul.addr %s262, 4
      %s266 = sadd.s32 %s264, %s265
      %s267 = smul.addr %s266, 8
      %s268 = scalar_lea.vmem %s5, %s267
      %s269 = smul.u32 2, %s21
      %p270 = scmp.lt.s32.totalorder %s20, 1
      %s271 = scalar_select %p270, %s20, 1
      %p272 = scmp.lt.s32.totalorder %s269, 1
      %s273 = scalar_select %p272, %s269, 1
      %s274 = smul.addr %s271, 8
      %s275 = sadd.s32 %s273, %s274
      %s276 = smul.addr %s275, 4
      %s277 = scalar_lea.vmem %s0, %s276
      %s278 = smul.u32 2, %s21
      %s279 = smul.u32 2, %s21
      %p280 = scmp.lt.s32.totalorder %s20, 1
      %s281 = scalar_select %p280, %s20, 1
      %p282 = scmp.lt.s32.totalorder %s279, 1
      %s283 = scalar_select %p282, %s279, 1
      %s284 = smul.addr %s281, 2
      %s285 = sadd.s32 %s283, %s284
      %s286 = smul.addr %s285, 8
      %s287 = scalar_lea.vmem %s1, %s286
      %s288 = smul.u32 2, %s21
      %p289 = scmp.lt.s32.totalorder %s20, 1
      %s290 = scalar_select %p289, %s20, 1
      %p291 = scmp.lt.s32.totalorder %s21, 0
      %s292 = scalar_select %p291, %s21, 0
      %s293 = smul.addr %s290, 4
      %s294 = sadd.s32 %s292, %s293
      %s295 = smul.addr %s294, 8
      %s296 = scalar_lea.vmem %s5, %s295
      %v298 = vld [vmem:[%s277] sm:$0xf]
      %v299 = vld [vmem:[%s277 + $0x4] sm:$0xf]
      %v300 = vld [vmem:[%s277 + $0x8] sm:$0xf]
      %v301 = vld [vmem:[%s277 + $0xc] sm:$0xf]
      %v302 = vld [vmem:[%s277 + $0x10] sm:$0xf]
      %v303 = vld [vmem:[%s277 + $0x14] sm:$0xf]
      %v304 = vld [vmem:[%s277 + $0x18] sm:$0xf]
      %v305 = vld [vmem:[%s277 + $0x1c] sm:$0xf]
      %v306 = vld [vmem:[%s2] sm:$0xf]
      %v307 = vld [vmem:[%s2 + $0x4] sm:$0x1]
      %v316 = vunpack.c.l.b16 %v298
      %v317 = vunpack.c.l.b16 %v299
      %v318 = vunpack.c.l.b16 %v300
      %v319 = vunpack.c.l.b16 %v301
      %v320 = vunpack.c.l.b16 %v302
      %v321 = vunpack.c.l.b16 %v303
      %v322 = vunpack.c.l.b16 %v304
      %v323 = vunpack.c.l.b16 %v305
      %v324 = vpack.c.b16 %v317, %v316
      %v325 = vpack.c.b16 %v319, %v318
      %v326 = vpack.c.b16 %v321, %v320
      %v327 = vpack.c.b16 %v323, %v322
      %v330 = vunpack.c.l.b16 %v306
      %v331 = vunpack.c.l.b16 %v307
      %v332 = vpack.c.b16 %v331, %v330
      %vm333 = vcmask 72704
      %v335 = vsel %vm333, %v324, 0
      %v338 = vsel %vm333, %v325, 0
      %v341 = vsel %vm333, %v326, 0
      %v344 = vsel %vm333, %v327, 0
      %vm346 = vcmask 1043456
      %vm347 = vcmask 1044480
      %v348 = vsel %vm346, 4294967295, 65535
      %v349 = vsel %vm347, %v348, 0
      %v351 = vand.u32 %v332, %v349
      %353 = vmatprep.subr.bf16.mxu0 0
      %354 = vmatpush1.bf16.msra.mxu0 %v351
      %355 = vmatprep.subr.bf16.mxu0 0
      %356 = vmatpush1.bf16.msra.mxu0 0
      %357 = vmatprep.subr.bf16.mxu0 0
      %358 = vmatpush1.bf16.msra.mxu0 0
      %359 = vmatprep.subr.bf16.mxu0 0
      %360 = vmatpush1.bf16.msra.mxu0 0
      %361 = vmatprep.subr.bf16.mxu0 0
      %362 = vmatpush1.bf16.msra.mxu0 0
      %363 = vmatprep.subr.bf16.mxu0 0
      %364 = vmatpush1.bf16.msra.mxu0 0
      %365 = vmatprep.subr.bf16.mxu0 0
      %366 = vmatpush1.bf16.msra.mxu0 0
      %367 = vmatprep.subr.bf16.mxu0 0
      %368 = vmatpush1.bf16.msra.mxu0 0
      %369 = vmatprep.subr.bf16.mxu0 0
      %370 = vmatpush1.bf16.msra.mxu0 0
      %371 = vmatprep.subr.bf16.mxu0 0
      %372 = vmatpush1.bf16.msra.mxu0 0
      %373 = vmatprep.subr.bf16.mxu0 0
      %374 = vmatpush1.bf16.msra.mxu0 0
      %375 = vmatprep.subr.bf16.mxu0 0
      %376 = vmatpush1.bf16.msra.mxu0 0
      %377 = vmatprep.subr.bf16.mxu0 0
      %378 = vmatpush1.bf16.msra.mxu0 0
      %379 = vmatprep.subr.bf16.mxu0 0
      %380 = vmatpush1.bf16.msra.mxu0 0
      %381 = vmatprep.subr.bf16.mxu0 0
      %382 = vmatpush1.bf16.msra.mxu0 0
      %383 = vmatprep.subr.bf16.mxu0 0
      %384 = vmatpush1.bf16.msra.mxu0 0
      %385 = vmatprep.mubr.bf16.mxu0 0
      %386 = vmatmul.mubr.bf16.gmra.mrb[0].mxu0 %v335
      %v387 = vpop.f32.mrb[0].mxu0
      %v388 = vadd.f32 0.0, %v387
      %v389 = vpop.f32.mrb[0].mxu0
      %v390 = vpop.f32.mrb[0].mxu0
      %v391 = vadd.f32 0.0, %v390
      %v392 = vpop.f32.mrb[0].mxu0
      %393 = vmatprep.mubr.bf16.mxu0 0
      %394 = vmatmul.mubr.bf16.gmra.mrb[0].mxu0 %v338
      %v395 = vpop.f32.mrb[0].mxu0
      %v396 = vadd.f32 0.0, %v395
      %v397 = vpop.f32.mrb[0].mxu0
      %v398 = vpop.f32.mrb[0].mxu0
      %v399 = vadd.f32 0.0, %v398
      %v400 = vpop.f32.mrb[0].mxu0
      %401 = vmatprep.mubr.bf16.mxu0 0
      %402 = vmatmul.mubr.bf16.gmra.mrb[0].mxu0 %v341
      %v403 = vpop.f32.mrb[0].mxu0
      %v404 = vadd.f32 0.0, %v403
      %v405 = vpop.f32.mrb[0].mxu0
      %v406 = vpop.f32.mrb[0].mxu0
      %v407 = vadd.f32 0.0, %v406
      %v408 = vpop.f32.mrb[0].mxu0
      %409 = vmatprep.mubr.bf16.mxu0 0
      %410 = vmatmul.mubr.bf16.gmra.mrb[0].mxu0 %v344
      %v411 = vpop.f32.mrb[0].mxu0
      %v412 = vadd.f32 0.0, %v411
      %v413 = vpop.f32.mrb[0].mxu0
      %v414 = vpop.f32.mrb[0].mxu0
      %v415 = vadd.f32 0.0, %v414
      %v416 = vpop.f32.mrb[0].mxu0
      %417 = vdwg.mxu0
      %v418 = vmax.f32 %v388, 0.0
      %v419 = vmax.f32 %v391, 0.0
      %v420 = vmax.f32 %v396, 0.0
      %v421 = vmax.f32 %v399, 0.0
      %v422 = vmax.f32 %v404, 0.0
      %v423 = vmax.f32 %v407, 0.0
      %v424 = vmax.f32 %v412, 0.0
      %v425 = vmax.f32 %v415, 0.0
      %v426 = vpack.c.bf16 %v419, %v418
      %v427 = vpack.c.bf16 %v421, %v420
      %v428 = vpack.c.bf16 %v423, %v422
      %v429 = vpack.c.bf16 %v425, %v424
      %v430 = vld [vmem:[%s3] sm:$0xf]
      %v431 = vld [vmem:[%s3 + $0x4] sm:$0xf]
      %v434 = vunpack.c.l.b16 %v430
      %v435 = vunpack.c.l.b16 %v431
      %v436 = vpack.c.b16 %v435, %v434
      %vm438 = vcmask 130048
      %v440 = vsel %vm438, %v426, 0
      %v443 = vsel %vm438, %v427, 0
      %v446 = vsel %vm438, %v428, 0
      %v449 = vsel %vm438, %v429, 0
      %451 = vmatprep.subr.bf16.mxu0 0
      %452 = vmatpush1.bf16.msra.mxu0 %v436
      %453 = vmatprep.subr.bf16.mxu0 0
      %454 = vmatpush1.bf16.msra.mxu0 0
      %455 = vmatprep.subr.bf16.mxu0 0
      %456 = vmatpush1.bf16.msra.mxu0 0
      %457 = vmatprep.subr.bf16.mxu0 0
      %458 = vmatpush1.bf16.msra.mxu0 0
      %459 = vmatprep.subr.bf16.mxu0 0
      %460 = vmatpush1.bf16.msra.mxu0 0
      %461 = vmatprep.subr.bf16.mxu0 0
      %462 = vmatpush1.bf16.msra.mxu0 0
      %463 = vmatprep.subr.bf16.mxu0 0
      %464 = vmatpush1.bf16.msra.mxu0 0
      %465 = vmatprep.subr.bf16.mxu0 0
      %466 = vmatpush1.bf16.msra.mxu0 0
      %467 = vmatprep.subr.bf16.mxu0 0
      %468 = vmatpush1.bf16.msra.mxu0 0
      %469 = vmatprep.subr.bf16.mxu0 0
      %470 = vmatpush1.bf16.msra.mxu0 0
      %471 = vmatprep.subr.bf16.mxu0 0
      %472 = vmatpush1.bf16.msra.mxu0 0
      %473 = vmatprep.subr.bf16.mxu0 0
      %474 = vmatpush1.bf16.msra.mxu0 0
      %475 = vmatprep.subr.bf16.mxu0 0
      %476 = vmatpush1.bf16.msra.mxu0 0
      %477 = vmatprep.subr.bf16.mxu0 0
      %478 = vmatpush1.bf16.msra.mxu0 0
      %479 = vmatprep.subr.bf16.mxu0 0
      %480 = vmatpush1.bf16.msra.mxu0 0
      %481 = vmatprep.subr.bf16.mxu0 0
      %482 = vmatpush1.bf16.msra.mxu0 0
      %483 = vmatprep.mubr.bf16.mxu0 0
      %484 = vmatmul.mubr.bf16.gmra.mrb[0].mxu0 %v440
      %v485 = vpop.f32.mrb[0].mxu0
      %v486 = vadd.f32 0.0, %v485
      %v487 = vpop.f32.mrb[0].mxu0
      %v488 = vpop.f32.mrb[0].mxu0
      %v489 = vadd.f32 0.0, %v488
      %v490 = vpop.f32.mrb[0].mxu0
      %491 = vmatprep.mubr.bf16.mxu0 0
      %492 = vmatmul.mubr.bf16.gmra.mrb[0].mxu0 %v443
      %v493 = vpop.f32.mrb[0].mxu0
      %v494 = vadd.f32 0.0, %v493
      %v495 = vpop.f32.mrb[0].mxu0
      %v496 = vpop.f32.mrb[0].mxu0
      %v497 = vadd.f32 0.0, %v496
      %v498 = vpop.f32.mrb[0].mxu0
      %499 = vmatprep.mubr.bf16.mxu0 0
      %500 = vmatmul.mubr.bf16.gmra.mrb[0].mxu0 %v446
      %v501 = vpop.f32.mrb[0].mxu0
      %v502 = vadd.f32 0.0, %v501
      %v503 = vpop.f32.mrb[0].mxu0
      %v504 = vpop.f32.mrb[0].mxu0
      %v505 = vadd.f32 0.0, %v504
      %v506 = vpop.f32.mrb[0].mxu0
      %507 = vmatprep.mubr.bf16.mxu0 0
      %508 = vmatmul.mubr.bf16.gmra.mrb[0].mxu0 %v449
      %v509 = vpop.f32.mrb[0].mxu0
      %v510 = vadd.f32 0.0, %v509
      %v511 = vpop.f32.mrb[0].mxu0
      %v512 = vpop.f32.mrb[0].mxu0
      %v513 = vadd.f32 0.0, %v512
      %v514 = vpop.f32.mrb[0].mxu0
      %515 = vdwg.mxu0
      %v516 = vmax.f32 %v486, 0.0
      %v517 = vmax.f32 %v489, 0.0
      %v518 = vmax.f32 %v494, 0.0
      %v519 = vmax.f32 %v497, 0.0
      %v520 = vmax.f32 %v502, 0.0
      %v521 = vmax.f32 %v505, 0.0
      %v522 = vmax.f32 %v510, 0.0
      %v523 = vmax.f32 %v513, 0.0
      %v524 = vpack.c.bf16 %v517, %v516
      %v525 = vpack.c.bf16 %v519, %v518
      %v526 = vpack.c.bf16 %v521, %v520
      %v527 = vpack.c.bf16 %v523, %v522
      %v528 = vmax.bf16 %v524, %v525
      %v529 = vmax.bf16 %v528, %v526
      %v530 = vmax.bf16 %v529, %v527
      %v531 = vld [vmem:[%s4] sm:$0xf]
      %v532 = vld [vmem:[%s4 + $0x4] sm:$0xf]
      %v533 = vld [vmem:[%s4 + $0x8] sm:$0xf]
      %v534 = vld [vmem:[%s4 + $0xc] sm:$0xf]
      %v535 = vld [vmem:[%s287] sm:$0xff]
      %v536 = vld [vmem:[%s287 + $0x8] sm:$0xff]
      %v541 = vunpack.c.l.b16 %v531
      %v542 = vunpack.c.l.b16 %v532
      %v543 = vunpack.c.l.b16 %v533
      %v544 = vunpack.c.l.b16 %v534
      %v545 = vpack.c.b16 %v542, %v541
      %v546 = vpack.c.b16 %v544, %v543
      %vm549 = vcmask 261120
      %v551 = vsel %vm549, %v530, 0
      %553 = vmatprep.subr.bf16.mxu0 0
      %554 = vmatpush1.bf16.msra.mxu0 %v545
      %555 = vmatprep.subr.bf16.mxu0 0
      %556 = vmatpush1.bf16.msra.mxu0 %v546
      %557 = vmatprep.subr.bf16.mxu0 0
      %558 = vmatpush1.bf16.msra.mxu0 0
      %559 = vmatprep.subr.bf16.mxu0 0
      %560 = vmatpush1.bf16.msra.mxu0 0
      %561 = vmatprep.subr.bf16.mxu0 0
      %562 = vmatpush1.bf16.msra.mxu0 0
      %563 = vmatprep.subr.bf16.mxu0 0
      %564 = vmatpush1.bf16.msra.mxu0 0
      %565 = vmatprep.subr.bf16.mxu0 0
      %566 = vmatpush1.bf16.msra.mxu0 0
      %567 = vmatprep.subr.bf16.mxu0 0
      %568 = vmatpush1.bf16.msra.mxu0 0
      %569 = vmatprep.subr.bf16.mxu0 0
      %570 = vmatpush1.bf16.msra.mxu0 0
      %571 = vmatprep.subr.bf16.mxu0 0
      %572 = vmatpush1.bf16.msra.mxu0 0
      %573 = vmatprep.subr.bf16.mxu0 0
      %574 = vmatpush1.bf16.msra.mxu0 0
      %575 = vmatprep.subr.bf16.mxu0 0
      %576 = vmatpush1.bf16.msra.mxu0 0
      %577 = vmatprep.subr.bf16.mxu0 0
      %578 = vmatpush1.bf16.msra.mxu0 0
      %579 = vmatprep.subr.bf16.mxu0 0
      %580 = vmatpush1.bf16.msra.mxu0 0
      %581 = vmatprep.subr.bf16.mxu0 0
      %582 = vmatpush1.bf16.msra.mxu0 0
      %583 = vmatprep.subr.bf16.mxu0 0
      %584 = vmatpush1.bf16.msra.mxu0 0
      %585 = vmatprep.mubr.bf16.mxu0 0
      %586 = vmatmul.mubr.bf16.gmra.mrb[0].mxu0 %v551
      %v587 = vpop.f32.mrb[0].mxu0
      %v588 = vadd.f32 %v535, %v587
      %v589 = vpop.f32.mrb[0].mxu0
      %v590 = vpop.f32.mrb[0].mxu0
      %v591 = vadd.f32 %v536, %v590
      %v592 = vpop.f32.mrb[0].mxu0
      %593 = vdwg.mxu0
      %v594 = vmax.f32 %v588, 0.0
      %v595 = vmax.f32 %v591, 0.0
      %596 = vxpose.xlu0.b32.start [1/16] %v594, 128
      %597 = vxpose.xlu0.b32.cont [2/16] %v595, 128
      %598 = vxpose.xlu0.b32.cont [3/16] 0.0, 128
      %599 = vxpose.xlu0.b32.cont [4/16] 0.0, 128
      %600 = vxpose.xlu0.b32.cont [5/16] 0.0, 128
      %601 = vxpose.xlu0.b32.cont [6/16] 0.0, 128
      %602 = vxpose.xlu0.b32.cont [7/16] 0.0, 128
      %603 = vxpose.xlu0.b32.cont [8/16] 0.0, 128
      %604 = vxpose.xlu0.b32.cont [9/16] 0.0, 128
      %605 = vxpose.xlu0.b32.cont [10/16] 0.0, 128
      %606 = vxpose.xlu0.b32.cont [11/16] 0.0, 128
      %607 = vxpose.xlu0.b32.cont [12/16] 0.0, 128
      %608 = vxpose.xlu0.b32.cont [13/16] 0.0, 128
      %609 = vxpose.xlu0.b32.cont [14/16] 0.0, 128
      %610 = vxpose.xlu0.b32.cont [15/16] 0.0, 128
      %611 = vxpose.xlu0.b32.end [16/16] 0.0, 128
      %v612 = vpop.trf.xlu0
      %v613 = vpop.trf.xlu0
      %v614 = vpop.trf.xlu0
      %v615 = vpop.trf.xlu0
      %v616 = vpop.trf.xlu0
      %v617 = vpop.trf.xlu0
      %v618 = vpop.trf.xlu0
      %v619 = vpop.trf.xlu0
      %v620 = vpop.trf.xlu0
      %v621 = vpop.trf.xlu0
      %v622 = vpop.trf.xlu0
      %v623 = vpop.trf.xlu0
      %v624 = vpop.trf.xlu0
      %v625 = vpop.trf.xlu0
      %v626 = vpop.trf.xlu0
      %v627 = vpop.trf.xlu0
      %628 = vst.msk [vmem:[%s296] sm:$0xff] %vm438, %v612
      %629 = vst.msk [vmem:[%s296 + $0x8] sm:$0xff] %vm438, %v613
      %630 = vst.msk [vmem:[%s296 + $0x10] sm:$0xff] %vm438, %v614
      %631 = vst.msk [vmem:[%s296 + $0x18] sm:$0xff] %vm438, %v615
      %p632 = scmp.lt.s32.totalorder %s20, 1
      %s633 = scalar_select %p632, %s20, 1
      %p634 = scmp.lt.s32.totalorder %s21, 0
      %s635 = scalar_select %p634, %s21, 0
      %s636 = smul.addr %s633, 4
      %s637 = sadd.s32 %s635, %s636
      %s638 = smul.addr %s637, 8
      %s639 = scalar_lea.vmem %s5, %s638
      // Predicated region
      $region41: #{tpu_custom_call.1} parent=39 // pred_check
        %p640 = pneg %p167
      $region42: #{tpu_custom_call.1} parent=39 // pred_check_branch
        %642 = sbr.rel (%p640) target = $region44
      $region43: #{tpu_custom_call.1} parent=39 // pred_region
        _
      $region44: #{tpu_custom_call.1} parent=39 // pred_fallthru
        _
    $region40: #{tpu_custom_call.1} parent=5 // pred_fallthru
      _
    %p643 = scmp.le.s32.totalorder 2, %s11
    // Predicated region
    $region45: #{tpu_custom_call.1} parent=5 // pred_check
      %p644 = pneg %p643
    $region46: #{tpu_custom_call.1} parent=5 // pred_check_branch
      %646 = sbr.rel (%p644) target = $region48
    $region47: #{tpu_custom_call.1} parent=5 // pred_region
      %s647 = ssub.s32 %s11, 2
      // Predicated region
      $region49: #{tpu_custom_call.1} parent=47 // pred_check
        %p648 = pneg %p173
      $region50: #{tpu_custom_call.1} parent=47 // pred_check_branch
        %650 = sbr.rel (%p648) target = $region52
      $region51: #{tpu_custom_call.1} parent=47 // pred_region
        %p651 = scmp.lt.s32.totalorder %s22, 1
        %s652 = scalar_select %p651, %s22, 1
        %p653 = scmp.lt.s32.totalorder %s23, 0
        %s654 = scalar_select %p653, %s23, 0
        %s655 = smul.addr %s652, 4
        %s656 = sadd.s32 %s654, %s655
        %s657 = smul.addr %s656, 8
        %s658 = scalar_lea.vmem %s5, %s657
      $region52: #{tpu_custom_call.1} parent=47 // pred_fallthru
        _
    $region48: #{tpu_custom_call.1} parent=5 // pred_fallthru
      _
  $region6: #{tpu_custom_call.1} parent=0 // loop_footer
    %s15 = sadd.s32 1, %s11
  $region7: #{tpu_custom_call.1} parent=0 // loop_footer_branch
    %10 = sbr.rel target = $region3
  $region8: #{tpu_custom_call.1} parent=0 // loop_exit
    _

</llo_original>
